<compile_context>
chip_gen: v7x
topology: tpu7x:2x2x1
jax: 0.10.0
libtpu: 0.0.40
codegen_flags: <defaults>
</compile_context>

<pallas_src>
import functools

import jax
import jax.numpy as jnp
import numpy as np
from jax.experimental import pallas as pl
from jax.experimental.pallas import tpu as pltpu

EPS = 1e-8  # matches the PyTorch module


# ----------------------------------------------------------------------------
# Pallas kernel: per-tile channel-wise LayerNorm for real and imag branches
# ----------------------------------------------------------------------------
def _cln_kernel(xr_ref, xi_ref, gr_ref, br_ref, gi_ref, bi_ref,
                or_ref, oi_ref, *, inv_c):
    def cln(x_ref, g_ref, b_ref, o_ref):
        x = x_ref[...].astype(jnp.float32)                     # (C, TM)
        mean = jnp.sum(x, axis=0, keepdims=True) * inv_c       # (1, TM)
        xc = x - mean
        var = jnp.sum(xc * xc, axis=0, keepdims=True) * inv_c  # (1, TM) biased var
        # fused affine: scale = gamma * rsqrt(var + eps) (broadcast (C,1)x(1,TM))
        scale = g_ref[...] * jax.lax.rsqrt(var + EPS)           # (C, TM)
        o_ref[...] = (xc * scale + b_ref[...]).astype(o_ref.dtype)

    cln(xr_ref, gr_ref, br_ref, or_ref)
    cln(xi_ref, gi_ref, bi_ref, oi_ref)


# ----------------------------------------------------------------------------
# Wrapper: layout glue (reshape/pad), grid/BlockSpec setup, un-flatten
# ----------------------------------------------------------------------------
def channelwise_layer_norm(y_real, y_imag,
                           gamma_real, beta_real, gamma_imag, beta_imag):
    B, C, F, T = y_real.shape
    M = F * T
    dtype = y_real.dtype

    # Tile the flattened spatial axis: ~1 MiB per tile buffer, multiple of 128 lanes.
    budget_bytes = 1 << 20
    tm_cap = max(128, min(8192, (budget_bytes // (4 * C)) // 128 * 128))
    tm = min(tm_cap, ((M + 127) // 128) * 128)
    m_pad = ((M + tm - 1) // tm) * tm

    def prep(x):
        x3 = x.reshape(B, C, M)                    # free: contiguous reshape
        if m_pad != M:
            x3 = jnp.pad(x3, ((0, 0), (0, 0), (0, m_pad - M)))
        return x3

    xr3 = prep(y_real)
    xi3 = prep(y_imag)
    gr = gamma_real.reshape(C, 1).astype(jnp.float32)
    br = beta_real.reshape(C, 1).astype(jnp.float32)
    gi = gamma_imag.reshape(C, 1).astype(jnp.float32)
    bi = beta_imag.reshape(C, 1).astype(jnp.float32)

    grid = (B, m_pad // tm)
    x_spec = pl.BlockSpec((None, C, tm), lambda b, j: (b, 0, j))
    p_spec = pl.BlockSpec((C, 1), lambda b, j: (0, 0))

    kernel = functools.partial(_cln_kernel, inv_c=1.0 / C)

    out_r3, out_i3 = pl.pallas_call(
        kernel,
        grid=grid,
        in_specs=[x_spec, x_spec, p_spec, p_spec, p_spec, p_spec],
        out_specs=(x_spec, x_spec),
        out_shape=(jax.ShapeDtypeStruct((B, C, m_pad), dtype),
                   jax.ShapeDtypeStruct((B, C, m_pad), dtype)),
        compiler_params=pltpu.CompilerParams(
            dimension_semantics=("parallel", "parallel")),
    )(xr3, xi3, gr, br, gi, bi)

    out_r = out_r3[:, :, :M].reshape(B, C, F, T)
    out_i = out_i3[:, :, :M].reshape(B, C, F, T)
    return out_r, out_i


# ----------------------------------------------------------------------------
# Pure-JAX reference for verification
# ----------------------------------------------------------------------------
def _module_ref(y_real, y_imag, gamma_real, beta_real, gamma_imag, beta_imag):
    def cln(y, g, b):
        m = jnp.mean(y, axis=1, keepdims=True)
        v = jnp.mean((y - m) ** 2, axis=1, keepdims=True)  # unbiased=False
        g4 = g.reshape(1, -1, 1, 1)
        b4 = b.reshape(1, -1, 1, 1)
        return g4 * (y - m) / jnp.sqrt(v + EPS) + b4

    return (cln(y_real, gamma_real, beta_real),
            cln(y_imag, gamma_imag, beta_imag))


# ----------------------------------------------------------------------------
if __name__ == "__main__":
    B, C, F, T = 2, 4, 16, 16
    key = jax.random.PRNGKey(0)
    k1, k2, k3, k4, k5, k6 = jax.random.split(key, 6)

    y_real = jax.random.normal(k1, (B, C, F, T), jnp.float32)
    y_imag = jax.random.normal(k2, (B, C, F, T), jnp.float32)
    # Module init is gamma=1 / beta=0; use non-trivial values to actually
    # exercise the per-channel affine path.
    gamma_real = 1.0 + 0.1 * jax.random.normal(k3, (C,), jnp.float32)
    beta_real = 0.1 * jax.random.normal(k4, (C,), jnp.float32)
    gamma_imag = 1.0 + 0.1 * jax.random.normal(k5, (C,), jnp.float32)
    beta_imag = 0.1 * jax.random.normal(k6, (C,), jnp.float32)

    out_r, out_i = channelwise_layer_norm(
        y_real, y_imag, gamma_real, beta_real, gamma_imag, beta_imag)
    out_r, out_i = jax.block_until_ready((out_r, out_i))

    ref_r, ref_i = _module_ref(
        y_real, y_imag, gamma_real, beta_real, gamma_imag, beta_imag)
    np.testing.assert_allclose(np.asarray(out_r), np.asarray(ref_r),
                               rtol=1e-4, atol=1e-5)
    np.testing.assert_allclose(np.asarray(out_i), np.asarray(ref_i),
                               rtol=1e-4, atol=1e-5)
    assert out_r.shape == (B, C, F, T) and out_i.shape == (B, C, F, T)

    print("KERNEL_OK")
</pallas_src>

<mosaic_0001>
module attributes {stable_mosaic.version = 11 : i64} {
  func.func @_cln_kernel(%arg0: i32, %arg1: i32, %arg2: memref<1x4x256xf32, #tpu.memory_space<vmem>>, %arg3: memref<1x4x256xf32, #tpu.memory_space<vmem>>, %arg4: memref<4x1xf32, #tpu.memory_space<vmem>>, %arg5: memref<4x1xf32, #tpu.memory_space<vmem>>, %arg6: memref<4x1xf32, #tpu.memory_space<vmem>>, %arg7: memref<4x1xf32, #tpu.memory_space<vmem>>, %arg8: memref<1x4x256xf32, #tpu.memory_space<vmem>>, %arg9: memref<1x4x256xf32, #tpu.memory_space<vmem>>) attributes {dimension_semantics = [#tpu.dimension_semantics<parallel>, #tpu.dimension_semantics<parallel>], iteration_bounds = array<i64: 2, 1>, scalar_prefetch = 0 : i64, scratch_operands = 0 : i64, tpu.core_type = #tpu.core_type<tc>, window_params = [{transform_indices = @transform_0, window_bounds = array<i64: 1, 4, 256>}, {transform_indices = @transform_1, window_bounds = array<i64: 1, 4, 256>}, {pipeline_mode = #tpu.pipeline_mode<synchronous>, transform_indices = @transform_2, window_bounds = array<i64: 4, 1>}, {pipeline_mode = #tpu.pipeline_mode<synchronous>, transform_indices = @transform_3, window_bounds = array<i64: 4, 1>}, {pipeline_mode = #tpu.pipeline_mode<synchronous>, transform_indices = @transform_4, window_bounds = array<i64: 4, 1>}, {pipeline_mode = #tpu.pipeline_mode<synchronous>, transform_indices = @transform_5, window_bounds = array<i64: 4, 1>}, {transform_indices = @transform_6, window_bounds = array<i64: 1, 4, 256>}, {transform_indices = @transform_7, window_bounds = array<i64: 1, 4, 256>}]} {
    %c0 = arith.constant 0 : index
    %c0_0 = arith.constant 0 : index
    %c0_1 = arith.constant 0 : index
    %0 = vector.load %arg2[%c0, %c0_0, %c0_1] : memref<1x4x256xf32, #tpu.memory_space<vmem>>, vector<1x4x256xf32>
    %1 = vector.shape_cast %0 : vector<1x4x256xf32> to vector<4x256xf32>
    %cst = arith.constant dense<0.000000e+00> : vector<256xf32>
    %2 = vector.multi_reduction <add>, %1, %cst [0] : vector<4x256xf32> to vector<256xf32>
    %3 = vector.shape_cast %2 : vector<256xf32> to vector<1x256xf32>
    %cst_2 = arith.constant 2.500000e-01 : f32
    %4 = vector.broadcast %cst_2 : f32 to vector<1x256xf32>
    %5 = arith.mulf %3, %4 : vector<1x256xf32>
    %6 = vector.broadcast %5 : vector<1x256xf32> to vector<4x256xf32>
    %7 = arith.subf %1, %6 : vector<4x256xf32>
    %8 = arith.mulf %7, %7 : vector<4x256xf32>
    %cst_3 = arith.constant dense<0.000000e+00> : vector<256xf32>
    %9 = vector.multi_reduction <add>, %8, %cst_3 [0] : vector<4x256xf32> to vector<256xf32>
    %10 = vector.shape_cast %9 : vector<256xf32> to vector<1x256xf32>
    %cst_4 = arith.constant 2.500000e-01 : f32
    %11 = vector.broadcast %cst_4 : f32 to vector<1x256xf32>
    %12 = arith.mulf %10, %11 : vector<1x256xf32>
    %c0_5 = arith.constant 0 : index
    %c0_6 = arith.constant 0 : index
    %13 = vector.load %arg4[%c0_5, %c0_6] : memref<4x1xf32, #tpu.memory_space<vmem>>, vector<4x1xf32>
    %cst_7 = arith.constant 9.99999993E-9 : f32
    %14 = vector.broadcast %cst_7 : f32 to vector<1x256xf32>
    %15 = arith.addf %12, %14 : vector<1x256xf32>
    %16 = math.rsqrt %15 : vector<1x256xf32>
    %17 = vector.broadcast %13 : vector<4x1xf32> to vector<4x256xf32>
    %18 = vector.broadcast %16 : vector<1x256xf32> to vector<4x256xf32>
    %19 = arith.mulf %17, %18 : vector<4x256xf32>
    %20 = arith.mulf %7, %19 : vector<4x256xf32>
    %c0_8 = arith.constant 0 : index
    %c0_9 = arith.constant 0 : index
    %21 = vector.load %arg5[%c0_8, %c0_9] : memref<4x1xf32, #tpu.memory_space<vmem>>, vector<4x1xf32>
    %22 = vector.broadcast %21 : vector<4x1xf32> to vector<4x256xf32>
    %23 = arith.addf %20, %22 : vector<4x256xf32>
    %c0_10 = arith.constant 0 : index
    %c0_11 = arith.constant 0 : index
    %c0_12 = arith.constant 0 : index
    %24 = vector.load %arg8[%c0_10, %c0_11, %c0_12] : memref<1x4x256xf32, #tpu.memory_space<vmem>>, vector<1x4x256xf32>
    %25 = vector.shape_cast %24 : vector<1x4x256xf32> to vector<4x256xf32>
    %26 = vector.shape_cast %23 : vector<4x256xf32> to vector<1x4x256xf32>
    tpu.vector_store %arg8[%c0_10, %c0_11, %c0_12], %26 {strides = array<i32>} : memref<1x4x256xf32, #tpu.memory_space<vmem>>, vector<1x4x256xf32>,
    %c0_13 = arith.constant 0 : index
    %c0_14 = arith.constant 0 : index
    %c0_15 = arith.constant 0 : index
    %27 = vector.load %arg3[%c0_13, %c0_14, %c0_15] : memref<1x4x256xf32, #tpu.memory_space<vmem>>, vector<1x4x256xf32>
    %28 = vector.shape_cast %27 : vector<1x4x256xf32> to vector<4x256xf32>
    %cst_16 = arith.constant dense<0.000000e+00> : vector<256xf32>
    %29 = vector.multi_reduction <add>, %28, %cst_16 [0] : vector<4x256xf32> to vector<256xf32>
    %30 = vector.shape_cast %29 : vector<256xf32> to vector<1x256xf32>
    %cst_17 = arith.constant 2.500000e-01 : f32
    %31 = vector.broadcast %cst_17 : f32 to vector<1x256xf32>
    %32 = arith.mulf %30, %31 : vector<1x256xf32>
    %33 = vector.broadcast %32 : vector<1x256xf32> to vector<4x256xf32>
    %34 = arith.subf %28, %33 : vector<4x256xf32>
    %35 = arith.mulf %34, %34 : vector<4x256xf32>
    %cst_18 = arith.constant dense<0.000000e+00> : vector<256xf32>
    %36 = vector.multi_reduction <add>, %35, %cst_18 [0] : vector<4x256xf32> to vector<256xf32>
    %37 = vector.shape_cast %36 : vector<256xf32> to vector<1x256xf32>
    %cst_19 = arith.constant 2.500000e-01 : f32
    %38 = vector.broadcast %cst_19 : f32 to vector<1x256xf32>
    %39 = arith.mulf %37, %38 : vector<1x256xf32>
    %c0_20 = arith.constant 0 : index
    %c0_21 = arith.constant 0 : index
    %40 = vector.load %arg6[%c0_20, %c0_21] : memref<4x1xf32, #tpu.memory_space<vmem>>, vector<4x1xf32>
    %cst_22 = arith.constant 9.99999993E-9 : f32
    %41 = vector.broadcast %cst_22 : f32 to vector<1x256xf32>
    %42 = arith.addf %39, %41 : vector<1x256xf32>
    %43 = math.rsqrt %42 : vector<1x256xf32>
    %44 = vector.broadcast %40 : vector<4x1xf32> to vector<4x256xf32>
    %45 = vector.broadcast %43 : vector<1x256xf32> to vector<4x256xf32>
    %46 = arith.mulf %44, %45 : vector<4x256xf32>
    %47 = arith.mulf %34, %46 : vector<4x256xf32>
    %c0_23 = arith.constant 0 : index
    %c0_24 = arith.constant 0 : index
    %48 = vector.load %arg7[%c0_23, %c0_24] : memref<4x1xf32, #tpu.memory_space<vmem>>, vector<4x1xf32>
    %49 = vector.broadcast %48 : vector<4x1xf32> to vector<4x256xf32>
    %50 = arith.addf %47, %49 : vector<4x256xf32>
    %c0_25 = arith.constant 0 : index
    %c0_26 = arith.constant 0 : index
    %c0_27 = arith.constant 0 : index
    %51 = vector.load %arg9[%c0_25, %c0_26, %c0_27] : memref<1x4x256xf32, #tpu.memory_space<vmem>>, vector<1x4x256xf32>
    %52 = vector.shape_cast %51 : vector<1x4x256xf32> to vector<4x256xf32>
    %53 = vector.shape_cast %50 : vector<4x256xf32> to vector<1x4x256xf32>
    tpu.vector_store %arg9[%c0_25, %c0_26, %c0_27], %53 {strides = array<i32>} : memref<1x4x256xf32, #tpu.memory_space<vmem>>, vector<1x4x256xf32>,
    return
  }
  func.func @transform_0(%arg0: i32, %arg1: i32) -> (i32, i32, i32) {
    %c0_i32 = arith.constant 0 : i32
    %c0_i32_0 = arith.constant 0 : i32
    return %arg0, %c0_i32, %arg1 : i32, i32, i32
  }
  func.func @transform_1(%arg0: i32, %arg1: i32) -> (i32, i32, i32) {
    %c0_i32 = arith.constant 0 : i32
    %c0_i32_0 = arith.constant 0 : i32
    return %arg0, %c0_i32, %arg1 : i32, i32, i32
  }
  func.func @transform_2(%arg0: i32, %arg1: i32) -> (i32, i32) {
    %c0_i32 = arith.constant 0 : i32
    %c0_i32_0 = arith.constant 0 : i32
    %c0_i32_1 = arith.constant 0 : i32
    return %c0_i32, %c0_i32_0 : i32, i32
  }
  func.func @transform_3(%arg0: i32, %arg1: i32) -> (i32, i32) {
    %c0_i32 = arith.constant 0 : i32
    %c0_i32_0 = arith.constant 0 : i32
    %c0_i32_1 = arith.constant 0 : i32
    return %c0_i32, %c0_i32_0 : i32, i32
  }
  func.func @transform_4(%arg0: i32, %arg1: i32) -> (i32, i32) {
    %c0_i32 = arith.constant 0 : i32
    %c0_i32_0 = arith.constant 0 : i32
    %c0_i32_1 = arith.constant 0 : i32
    return %c0_i32, %c0_i32_0 : i32, i32
  }
  func.func @transform_5(%arg0: i32, %arg1: i32) -> (i32, i32) {
    %c0_i32 = arith.constant 0 : i32
    %c0_i32_0 = arith.constant 0 : i32
    %c0_i32_1 = arith.constant 0 : i32
    return %c0_i32, %c0_i32_0 : i32, i32
  }
  func.func @transform_6(%arg0: i32, %arg1: i32) -> (i32, i32, i32) {
    %c0_i32 = arith.constant 0 : i32
    %c0_i32_0 = arith.constant 0 : i32
    return %arg0, %c0_i32, %arg1 : i32, i32, i32
  }
  func.func @transform_7(%arg0: i32, %arg1: i32) -> (i32, i32, i32) {
    %c0_i32 = arith.constant 0 : i32
    %c0_i32_0 = arith.constant 0 : i32
    return %arg0, %c0_i32, %arg1 : i32, i32, i32
  }
}

</mosaic_0001>

<llo_original>
// kernel: tpu_custom_call.1
$region0: #{tpu_custom_call.1}
  #allocation0 [shape = 'u32[]', space=smem, size = 0x4, offset = 0x4, fixed_abs, tag = 'smem constant byte address 0x4 - core index']
  #allocation1 [shape = 'u32[144,128]{1,0:T(1,128)}', space=vmem, size = 0x12000, scoped, tag = 'internal scratch']
  %s0 = inlined_call_operand.vmem [shape: f32[2,4,256], index: 0, kind: input, shape index: {}]
  %s1 = inlined_call_operand.hbm [shape: f32[2,4,256], index: 1, kind: input, shape index: {}]
  %s2 = inlined_call_operand.vmem [shape: f32[4,1], index: 2, kind: input, shape index: {}]
  %s3 = inlined_call_operand.vmem [shape: f32[4,1], index: 3, kind: input, shape index: {}]
  %s4 = inlined_call_operand.vmem [shape: f32[4,1], index: 4, kind: input, shape index: {}]
  %s5 = inlined_call_operand.vmem [shape: f32[4,1], index: 5, kind: input, shape index: {}]
  %s6 = inlined_call_operand.hbm [shape: f32[2,4,256], index: 6, kind: output, shape index: {0}]
  %s7 = inlined_call_operand.hbm [shape: f32[2,4,256], index: 7, kind: output, shape index: {1}]
  %8 = xla_tuple %s6, %s7
  %s9 = sld [smem:[#allocation0]]
  $region69: #{tpu_custom_call.1} parent=0
    _
  %s11 = ssub.s32 1, %s9
  %s12 = scalar_select 0, %s11, %s9
  $region1: #{tpu_custom_call.1} parent=0
    #allocation2 [shape = 'u8[8192]{0}', space=vmem, size = 0x2000, scoped, tag = 'input window, operand 1']
    #allocation3 [shape = 's32[2]{0}', space=sflag, size = 0x8, scoped, tag = 'scoped memory for tpu_custom_call.1']
    #allocation4 [shape = 's32[2]{0}', space=sflag, size = 0x8, scoped, tag = 'scoped memory for tpu_custom_call.1']
    #allocation5 [shape = 'u8[8192]{0}', space=vmem, size = 0x2000, scoped, tag = 'output window, operand 0']
    #allocation6 [shape = 'u8[8192]{0}', space=vmem, size = 0x2000, scoped, tag = 'output window, operand 1']
    #allocation7 [shape = 's32[2]{0}', space=sflag, size = 0x8, scoped, tag = 'scoped memory for tpu_custom_call.1']
    %13 = vsyncpa [#allocation3], 0
    %s14 = scalar_lea.sflag [#allocation3], 1
    %15 = vsyncpa %s14, 0
    %16 = vsyncpa [#allocation4], 0
    %s17 = scalar_lea.sflag [#allocation4], 1
    %18 = vsyncpa %s17, 0
    %19 = vsyncpa [#allocation7], 0
    %s20 = scalar_lea.sflag [#allocation7], 1
    %21 = vsyncpa %s20, 0
    loop: start=0, step=1, limit=4
    $region2: #{tpu_custom_call.1} parent=1 // loop_pre_header
      _
    $region3: #{tpu_custom_call.1} parent=1 // loop_header
      %s23 = sphi 0, %s27
      %p24 = scmp.ge.s32.totalorder %s23, 4
      %s30 = sphi 0, %s42
      %s31 = sphi 0, %s38
      %s32 = sphi 0, %s30
      %s33 = sphi 0, %s31
      %s34 = sphi 0, %s32
      %s35 = sphi 0, %s33
      %s47 = sphi 0, %s49
      %s50 = sphi 0, %s47
      %s51 = sphi 0, %s50
      %s67 = sphi 0, %s51
      %s75 = sphi 0, %s77
      %s78 = sphi 0, %s75
      %s79 = sphi 0, %s78
      %s95 = sphi 0, %s79
      %s99 = sphi 0, %s99
      %s101 = sphi 0, %s99
      %s102 = sphi 0, %s101
      %s116 = sphi 0, %s102
      %s120 = sphi 0, %s120
      %s122 = sphi 0, %s120
      %s123 = sphi 0, %s122
      %s137 = sphi 0, %s123
      %s141 = sphi 0, %s141
      %s143 = sphi 0, %s141
      %s144 = sphi 0, %s143
      %s158 = sphi 0, %s144
      %s162 = sphi 0, %s162
      %s164 = sphi 0, %s162
      %s165 = sphi 0, %s164
      %s179 = sphi 0, %s165
      %s187 = sphi 0, %s189
      %s190 = sphi 0, %s187
      %s191 = sphi 0, %s190
      %s207 = sphi 0, %s191
      %s215 = sphi 0, %s217
      %s218 = sphi 0, %s215
      %s219 = sphi 0, %s218
      %s235 = sphi 0, %s219
    $region4: #{tpu_custom_call.1} parent=1 // loop_header_branch
      %26 = sbr.rel (%p24) target = $region8
    $region5: #{tpu_custom_call.1} parent=1 // loop_body
      %s28 = ssub.s32 %s23, 1
      %s29 = ssub.s32 %s23, 2
      %s36 = sadd.s32 1, %s31
      %p37 = scmp.ge.s32.totalorder %s36, 1
      %s38 = scalar_select %p37, 0, %s36
      %s39 = sadd.s32 1, %s30
      %s40 = scalar_select %p37, %s39, %s30
      %p41 = scmp.ge.s32.totalorder %s40, 2
      %s42 = scalar_select %p41, 0, %s40
      %s43 = ssub.s32 %s30, %s42
      %s44 = ssub.s32 %s31, %s38
      %s45 = sor.u32 %s43, %s44
      %p46 = scmp.eq.s32.totalorder %s45, 0
      %s48 = sadd.s32 %s47, 1
      %s49 = scalar_select %p46, %s47, %s48
      %p52 = pneg %p46
      %p53 = scmp.eq.s32.totalorder %s23, 1
      %p54 = por %p52, %p53
      %p55 = scmp.ne.s32.totalorder %s47, %s50
      %p56 = scmp.eq.s32.totalorder %s23, 0
      %p57 = por %p55, %p56
      %p58 = scmp.ne.s32.totalorder %s47, %s50
      %p59 = scmp.eq.s32.totalorder %s28, 1
      %p60 = por %p58, %p59
      %p61 = scmp.ne.s32.totalorder %s50, %s51
      %p62 = scmp.eq.s32.totalorder %s28, 0
      %p63 = por %p61, %p62
      %p64 = scmp.ne.s32.totalorder %s50, %s51
      %p65 = scmp.eq.s32.totalorder %s29, 1
      %p66 = por %p64, %p65
      %p68 = scmp.ne.s32.totalorder %s51, %s67
      %p69 = scmp.eq.s32.totalorder %s29, 0
      %p70 = por %p68, %p69
      %s71 = ssub.s32 %s30, %s42
      %s72 = ssub.s32 %s31, %s38
      %s73 = sor.u32 %s71, %s72
      %p74 = scmp.eq.s32.totalorder %s73, 0
      %s76 = sadd.s32 %s75, 1
      %s77 = scalar_select %p74, %s75, %s76
      %p80 = pneg %p74
      %p81 = scmp.eq.s32.totalorder %s23, 1
      %p82 = por %p80, %p81
      %p83 = scmp.ne.s32.totalorder %s75, %s78
      %p84 = scmp.eq.s32.totalorder %s23, 0
      %p85 = por %p83, %p84
      %p86 = scmp.ne.s32.totalorder %s75, %s78
      %p87 = scmp.eq.s32.totalorder %s28, 1
      %p88 = por %p86, %p87
      %p89 = scmp.ne.s32.totalorder %s78, %s79
      %p90 = scmp.eq.s32.totalorder %s28, 0
      %p91 = por %p89, %p90
      %p92 = scmp.ne.s32.totalorder %s78, %s79
      %p93 = scmp.eq.s32.totalorder %s29, 1
      %p94 = por %p92, %p93
      %p96 = scmp.ne.s32.totalorder %s79, %s95
      %p97 = scmp.eq.s32.totalorder %s29, 0
      %p98 = por %p96, %p97
      %s100 = sadd.s32 %s99, 1
      %p103 = scmp.eq.s32.totalorder %s23, 1
      %p104 = scmp.ne.s32.totalorder %s99, %s101
      %p105 = scmp.eq.s32.totalorder %s23, 0
      %p106 = por %p104, %p105
      %p107 = scmp.ne.s32.totalorder %s99, %s101
      %p108 = scmp.eq.s32.totalorder %s28, 1
      %p109 = por %p107, %p108
      %p110 = scmp.ne.s32.totalorder %s101, %s102
      %p111 = scmp.eq.s32.totalorder %s28, 0
      %p112 = por %p110, %p111
      %p113 = scmp.ne.s32.totalorder %s101, %s102
      %p114 = scmp.eq.s32.totalorder %s29, 1
      %p115 = por %p113, %p114
      %p117 = scmp.ne.s32.totalorder %s102, %s116
      %p118 = scmp.eq.s32.totalorder %s29, 0
      %p119 = por %p117, %p118
      %s121 = sadd.s32 %s120, 1
      %p124 = scmp.eq.s32.totalorder %s23, 1
      %p125 = scmp.ne.s32.totalorder %s120, %s122
      %p126 = scmp.eq.s32.totalorder %s23, 0
      %p127 = por %p125, %p126
      %p128 = scmp.ne.s32.totalorder %s120, %s122
      %p129 = scmp.eq.s32.totalorder %s28, 1
      %p130 = por %p128, %p129
      %p131 = scmp.ne.s32.totalorder %s122, %s123
      %p132 = scmp.eq.s32.totalorder %s28, 0
      %p133 = por %p131, %p132
      %p134 = scmp.ne.s32.totalorder %s122, %s123
      %p135 = scmp.eq.s32.totalorder %s29, 1
      %p136 = por %p134, %p135
      %p138 = scmp.ne.s32.totalorder %s123, %s137
      %p139 = scmp.eq.s32.totalorder %s29, 0
      %p140 = por %p138, %p139
      %s142 = sadd.s32 %s141, 1
      %p145 = scmp.eq.s32.totalorder %s23, 1
      %p146 = scmp.ne.s32.totalorder %s141, %s143
      %p147 = scmp.eq.s32.totalorder %s23, 0
      %p148 = por %p146, %p147
      %p149 = scmp.ne.s32.totalorder %s141, %s143
      %p150 = scmp.eq.s32.totalorder %s28, 1
      %p151 = por %p149, %p150
      %p152 = scmp.ne.s32.totalorder %s143, %s144
      %p153 = scmp.eq.s32.totalorder %s28, 0
      %p154 = por %p152, %p153
      %p155 = scmp.ne.s32.totalorder %s143, %s144
      %p156 = scmp.eq.s32.totalorder %s29, 1
      %p157 = por %p155, %p156
      %p159 = scmp.ne.s32.totalorder %s144, %s158
      %p160 = scmp.eq.s32.totalorder %s29, 0
      %p161 = por %p159, %p160
      %s163 = sadd.s32 %s162, 1
      %p166 = scmp.eq.s32.totalorder %s23, 1
      %p167 = scmp.ne.s32.totalorder %s162, %s164
      %p168 = scmp.eq.s32.totalorder %s23, 0
      %p169 = por %p167, %p168
      %p170 = scmp.ne.s32.totalorder %s162, %s164
      %p171 = scmp.eq.s32.totalorder %s28, 1
      %p172 = por %p170, %p171
      %p173 = scmp.ne.s32.totalorder %s164, %s165
      %p174 = scmp.eq.s32.totalorder %s28, 0
      %p175 = por %p173, %p174
      %p176 = scmp.ne.s32.totalorder %s164, %s165
      %p177 = scmp.eq.s32.totalorder %s29, 1
      %p178 = por %p176, %p177
      %p180 = scmp.ne.s32.totalorder %s165, %s179
      %p181 = scmp.eq.s32.totalorder %s29, 0
      %p182 = por %p180, %p181
      %s183 = ssub.s32 %s30, %s42
      %s184 = ssub.s32 %s31, %s38
      %s185 = sor.u32 %s183, %s184
      %p186 = scmp.eq.s32.totalorder %s185, 0
      %s188 = sadd.s32 %s187, 1
      %s189 = scalar_select %p186, %s187, %s188
      %p192 = pneg %p186
      %p193 = scmp.eq.s32.totalorder %s23, 1
      %p194 = por %p192, %p193
      %p195 = scmp.ne.s32.totalorder %s187, %s190
      %p196 = scmp.eq.s32.totalorder %s23, 0
      %p197 = por %p195, %p196
      %p198 = scmp.ne.s32.totalorder %s187, %s190
      %p199 = scmp.eq.s32.totalorder %s28, 1
      %p200 = por %p198, %p199
      %p201 = scmp.ne.s32.totalorder %s190, %s191
      %p202 = scmp.eq.s32.totalorder %s28, 0
      %p203 = por %p201, %p202
      %p204 = scmp.ne.s32.totalorder %s190, %s191
      %p205 = scmp.eq.s32.totalorder %s29, 1
      %p206 = por %p204, %p205
      %p208 = scmp.ne.s32.totalorder %s191, %s207
      %p209 = scmp.eq.s32.totalorder %s29, 0
      %p210 = por %p208, %p209
      %s211 = ssub.s32 %s30, %s42
      %s212 = ssub.s32 %s31, %s38
      %s213 = sor.u32 %s211, %s212
      %p214 = scmp.eq.s32.totalorder %s213, 0
      %s216 = sadd.s32 %s215, 1
      %s217 = scalar_select %p214, %s215, %s216
      %p220 = pneg %p214
      %p221 = scmp.eq.s32.totalorder %s23, 1
      %p222 = por %p220, %p221
      %p223 = scmp.ne.s32.totalorder %s215, %s218
      %p224 = scmp.eq.s32.totalorder %s23, 0
      %p225 = por %p223, %p224
      %p226 = scmp.ne.s32.totalorder %s215, %s218
      %p227 = scmp.eq.s32.totalorder %s28, 1
      %p228 = por %p226, %p227
      %p229 = scmp.ne.s32.totalorder %s218, %s219
      %p230 = scmp.eq.s32.totalorder %s28, 0
      %p231 = por %p229, %p230
      %p232 = scmp.ne.s32.totalorder %s218, %s219
      %p233 = scmp.eq.s32.totalorder %s29, 1
      %p234 = por %p232, %p233
      %p236 = scmp.ne.s32.totalorder %s219, %s235
      %p237 = scmp.eq.s32.totalorder %s29, 0
      %p238 = por %p236, %p237
      %p239 = scmp.le.s32.totalorder 1, %s23
      %p240 = scmp.lt.s32.totalorder %s23, 3
      %p241 = pnand %p239, %p240
      %p242 = pneg %p241
      // Predicated region
      $region9: #{tpu_custom_call.1} parent=5 // pred_check
        _
      $region10: #{tpu_custom_call.1} parent=5 // pred_check_branch
        %244 = sbr.rel (%p241) target = $region12
      $region11: #{tpu_custom_call.1} parent=5 // pred_region
        %s245 = ssub.s32 %s23, 1
        // Predicated region
        $region13: #{tpu_custom_call.1} parent=11 // pred_check
          %p246 = pneg %p112
        $region14: #{tpu_custom_call.1} parent=11 // pred_check_branch
          %248 = sbr.rel (%p246) target = $region16
        $region15: #{tpu_custom_call.1} parent=11 // pred_region
          _
        $region16: #{tpu_custom_call.1} parent=11 // pred_fallthru
          _
        // Predicated region
        $region17: #{tpu_custom_call.1} parent=11 // pred_check
          %p249 = pneg %p133
        $region18: #{tpu_custom_call.1} parent=11 // pred_check_branch
          %251 = sbr.rel (%p249) target = $region20
        $region19: #{tpu_custom_call.1} parent=11 // pred_region
          _
        $region20: #{tpu_custom_call.1} parent=11 // pred_fallthru
          _
        // Predicated region
        $region21: #{tpu_custom_call.1} parent=11 // pred_check
          %p252 = pneg %p154
        $region22: #{tpu_custom_call.1} parent=11 // pred_check_branch
          %254 = sbr.rel (%p252) target = $region24
        $region23: #{tpu_custom_call.1} parent=11 // pred_region
          _
        $region24: #{tpu_custom_call.1} parent=11 // pred_fallthru
          _
        // Predicated region
        $region25: #{tpu_custom_call.1} parent=11 // pred_check
          %p255 = pneg %p175
        $region26: #{tpu_custom_call.1} parent=11 // pred_check_branch
          %257 = sbr.rel (%p255) target = $region28
        $region27: #{tpu_custom_call.1} parent=11 // pred_region
          _
        $region28: #{tpu_custom_call.1} parent=11 // pred_fallthru
          _
      $region12: #{tpu_custom_call.1} parent=5 // pred_fallthru
        _
      %p258 = scmp.lt.s32.totalorder %s23, 2
      // Predicated region
      $region29: #{tpu_custom_call.1} parent=5 // pred_check
        %p259 = pneg %p258
      $region30: #{tpu_custom_call.1} parent=5 // pred_check_branch
        %261 = sbr.rel (%p259) target = $region32
      $region31: #{tpu_custom_call.1} parent=5 // pred_region
        // Predicated region
        $region33: #{tpu_custom_call.1} parent=31 // pred_check
          %p262 = pneg %p57
        $region34: #{tpu_custom_call.1} parent=31 // pred_check_branch
          %264 = sbr.rel (%p262) target = $region36
        $region35: #{tpu_custom_call.1} parent=31 // pred_region
          %s265 = smul.u32 2, %s31
          %p266 = scmp.lt.s32.totalorder %s30, 1
          %s267 = scalar_select %p266, %s30, 1
          %p268 = scmp.lt.s32.totalorder %s265, 1
          %s269 = scalar_select %p268, %s265, 1
          %s270 = smul.addr %s267, 2
          %s271 = sadd.s32 %s269, %s270
          %s272 = smul.addr %s271, 4
          %s273 = scalar_lea.vmem %s0, %s272
          %s274 = smul.u32 2, %s31
        $region36: #{tpu_custom_call.1} parent=31 // pred_fallthru
          _
        // Predicated region
        $region37: #{tpu_custom_call.1} parent=31 // pred_check
          %p275 = pneg %p85
        $region38: #{tpu_custom_call.1} parent=31 // pred_check_branch
          %277 = sbr.rel (%p275) target = $region40
        $region39: #{tpu_custom_call.1} parent=31 // pred_region
          %s278 = sand.u32 %s75, 1
          %s279 = scalar_lea.sflag [#allocation3], %s278
          %s280 = sand.u32 %s75, 1
          %s281 = smul.addr %s280, 8
          %s282 = scalar_lea.vmem [#allocation2], %s281
          %s283 = smul.u32 2, %s31
          %s285 = ssub.s32 128, 128
          %286 = vsyncadd %s279, %s285
          %s287 = smul.addr %s30, 2
          %s288 = sadd.s32 %s283, %s287
          %s289 = smul.addr %s288, 64
          %s290 = scalar_lea.hbm %s1, %s289
          %s292 = sshll.u32 %s282, 4
          %s293 = int_to_ptr.vmem [resolvable:$true] %s292
          %295 = dma.hbm_to_vmem [thread:$0]  %s290, 128, %s293, %s279
        $region40: #{tpu_custom_call.1} parent=31 // pred_fallthru
          _
      $region32: #{tpu_custom_call.1} parent=5 // pred_fallthru
        _
      %p296 = scmp.le.s32.totalorder 1, %s23
      %p297 = scmp.lt.s32.totalorder %s23, 3
      %p298 = pnand %p296, %p297
      %p299 = pneg %p298
      // Predicated region
      $region41: #{tpu_custom_call.1} parent=5 // pred_check
        _
      $region42: #{tpu_custom_call.1} parent=5 // pred_check_branch
        %301 = sbr.rel (%p298) target = $region44
      $region43: #{tpu_custom_call.1} parent=5 // pred_region
        %s302 = ssub.s32 %s23, 1
        %s303 = sand.u32 %s78, 1
        %s304 = scalar_lea.sflag [#allocation3], %s303
        %s305 = sand.u32 %s78, 1
        %s306 = smul.addr %s305, 8
        %s307 = scalar_lea.vmem [#allocation2], %s306
        // Predicated region
        $region45: #{tpu_custom_call.1} parent=43 // pred_check
          %p308 = pneg %p91
        $region46: #{tpu_custom_call.1} parent=43 // pred_check_branch
          %310 = sbr.rel (%p308) target = $region48
        $region47: #{tpu_custom_call.1} parent=43 // pred_region
          %311 = dma.done %s304, 128
        $region48: #{tpu_custom_call.1} parent=43 // pred_fallthru
          _
        %s312 = smul.u32 2, %s33
        %p313 = scmp.lt.s32.totalorder %s32, 1
        %s314 = scalar_select %p313, %s32, 1
        %p315 = scmp.lt.s32.totalorder %s312, 1
        %s316 = scalar_select %p315, %s312, 1
        %s317 = smul.addr %s314, 2
        %s318 = sadd.s32 %s316, %s317
        %s319 = smul.addr %s318, 4
        %s320 = scalar_lea.vmem %s0, %s319
        %p321 = pneg %p63
        %p322 = pneg %p60
        %s323 = sand.u32 %s78, 1
        %s324 = scalar_lea.sflag [#allocation3], %s323
        %s325 = sand.u32 %s78, 1
        %s326 = smul.addr %s325, 8
        %s327 = scalar_lea.vmem [#allocation2], %s326
        %p328 = pneg %p91
        %p329 = pneg %p88
        %p330 = pneg %p112
        %p331 = pneg %p109
        %p332 = pneg %p133
        %p333 = pneg %p130
        %p334 = pneg %p154
        %p335 = pneg %p151
        %p336 = pneg %p175
        %p337 = pneg %p172
        %p338 = pneg %p203
        %p339 = pneg %p200
        %s340 = sand.u32 %s190, 1
        %s341 = scalar_lea.sflag [#allocation4], %s340
        %s342 = sand.u32 %s190, 1
        %s343 = smul.addr %s342, 8
        %s344 = scalar_lea.vmem [#allocation5], %s343
        %p345 = pneg %p231
        %p346 = pneg %p228
        %s347 = sand.u32 %s218, 1
        %s348 = scalar_lea.sflag [#allocation7], %s347
        %s349 = sand.u32 %s218, 1
        %s350 = smul.addr %s349, 8
        %s351 = scalar_lea.vmem [#allocation6], %s350
        %s352 = smul.u32 2, %s33
        %p353 = scmp.lt.s32.totalorder %s32, 1
        %s354 = scalar_select %p353, %s32, 1
        %p355 = scmp.lt.s32.totalorder %s352, 1
        %s356 = scalar_select %p355, %s352, 1
        %s357 = smul.addr %s354, 2
        %s358 = sadd.s32 %s356, %s357
        %s359 = smul.addr %s358, 4
        %s360 = scalar_lea.vmem %s0, %s359
        %s361 = smul.u32 2, %s33
        %s362 = smul.u32 2, %s33
        %s363 = smul.u32 2, %s33
        %s364 = smul.u32 2, %s33
        %v365 = vld [vmem:[%s360] sm:$0xff]
        %v367 = vcombine.high %v365, %v365
        %vm369 = vcmask 1043456
        %v370 = vsel %vm369, %v365, 0.0
        %v371 = vrot.slane %v370, 4
        %v372 = vadd.f32 %v370, %v371
        %v373 = vrot.slane %v372, 2
        %v374 = vadd.f32 %v372, %v373
        %v375 = vrot.slane %v374, 1
        %v376 = vadd.f32 %v374, %v375
        %v377 = vsel %vm369, %v367, 0.0
        %v378 = vrot.slane %v377, 4
        %v379 = vadd.f32 %v377, %v378
        %v380 = vrot.slane %v379, 2
        %v381 = vadd.f32 %v379, %v380
        %v382 = vrot.slane %v381, 1
        %v383 = vadd.f32 %v381, %v382
        %v384 = vmul.f32 %v376, 0.25
        %v385 = vmul.f32 %v383, 0.25
        %v388 = vcombine.low %v384, %v385
        %v390 = vsub.f32 %v365, %v388
        %v391 = vmul.f32 %v390, %v390
        %v393 = vcombine.high %v391, %v391
        %v395 = vsel %vm369, %v391, 0.0
        %v396 = vrot.slane %v395, 4
        %v397 = vadd.f32 %v395, %v396
        %v398 = vrot.slane %v397, 2
        %v399 = vadd.f32 %v397, %v398
        %v400 = vrot.slane %v399, 1
        %v401 = vadd.f32 %v399, %v400
        %v402 = vsel %vm369, %v393, 0.0
        %v403 = vrot.slane %v402, 4
        %v404 = vadd.f32 %v402, %v403
        %v405 = vrot.slane %v404, 2
        %v406 = vadd.f32 %v404, %v405
        %v407 = vrot.slane %v406, 1
        %v408 = vadd.f32 %v406, %v407
        %v409 = vmul.f32 %v401, 0.25
        %v410 = vmul.f32 %v408, 0.25
        %v411 = vld [vmem:[%s2] sm:$0xf]
        %v412 = vadd.f32 %v409, 1e-08
        %v413 = vadd.f32 %v410, 1e-08
        %v414 = vrsqrt.pop %v412
        %v415 = vrsqrt.pop %v413
        %417 = vset.pattern.permute.xlu0 0
        %418 = vperm.xlu0 %417, %v411
        %v419 = vpop.permute.xlu0 %418
        %v421 = vmul.f32 %v419, %v414
        %v422 = vmul.f32 %v419, %v415
        %v425 = vcombine.low %v421, %v422
        %v427 = vmul.f32 %v390, %v425
        %v428 = vld [vmem:[%s3] sm:$0xf]
        %430 = vset.pattern.permute.xlu0 0
        %431 = vperm.xlu0 %430, %v428
        %v432 = vpop.permute.xlu0 %431
        %v434 = vunpack.c.l.s4 839922192
        %v435 = vunpack.c.0.s8 %v434
        %v436 = vlaneseq
        %v437 = vshrl.u32 %v436, 7
        %v438 = vsub.s32 %v435, %v437
        %v439 = vrot.slane %v432, %v438
        %v441 = vadd.f32 %v427, %v439
        %442 = vst [vmem:[%s344] sm:$0xff] %v441
        %v443 = vld [vmem:[%s307] sm:$0xff]
        %v445 = vcombine.high %v443, %v443
        %v447 = vsel %vm369, %v443, 0.0
        %v448 = vrot.slane %v447, 4
        %v449 = vadd.f32 %v447, %v448
        %v450 = vrot.slane %v449, 2
        %v451 = vadd.f32 %v449, %v450
        %v452 = vrot.slane %v451, 1
        %v453 = vadd.f32 %v451, %v452
        %v454 = vsel %vm369, %v445, 0.0
        %v455 = vrot.slane %v454, 4
        %v456 = vadd.f32 %v454, %v455
        %v457 = vrot.slane %v456, 2
        %v458 = vadd.f32 %v456, %v457
        %v459 = vrot.slane %v458, 1
        %v460 = vadd.f32 %v458, %v459
        %v461 = vmul.f32 %v453, 0.25
        %v462 = vmul.f32 %v460, 0.25
        %v465 = vcombine.low %v461, %v462
        %v467 = vsub.f32 %v443, %v465
        %v468 = vmul.f32 %v467, %v467
        %v470 = vcombine.high %v468, %v468
        %v472 = vsel %vm369, %v468, 0.0
        %v473 = vrot.slane %v472, 4
        %v474 = vadd.f32 %v472, %v473
        %v475 = vrot.slane %v474, 2
        %v476 = vadd.f32 %v474, %v475
        %v477 = vrot.slane %v476, 1
        %v478 = vadd.f32 %v476, %v477
        %v479 = vsel %vm369, %v470, 0.0
        %v480 = vrot.slane %v479, 4
        %v481 = vadd.f32 %v479, %v480
        %v482 = vrot.slane %v481, 2
        %v483 = vadd.f32 %v481, %v482
        %v484 = vrot.slane %v483, 1
        %v485 = vadd.f32 %v483, %v484
        %v486 = vmul.f32 %v478, 0.25
        %v487 = vmul.f32 %v485, 0.25
        %v488 = vld [vmem:[%s4] sm:$0xf]
        %v489 = vadd.f32 %v486, 1e-08
        %v490 = vadd.f32 %v487, 1e-08
        %v491 = vrsqrt.pop %v489
        %v492 = vrsqrt.pop %v490
        %494 = vset.pattern.permute.xlu0 0
        %495 = vperm.xlu0 %494, %v488
        %v496 = vpop.permute.xlu0 %495
        %v498 = vmul.f32 %v496, %v491
        %v499 = vmul.f32 %v496, %v492
        %v502 = vcombine.low %v498, %v499
        %v504 = vmul.f32 %v467, %v502
        %v505 = vld [vmem:[%s5] sm:$0xf]
        %507 = vset.pattern.permute.xlu0 0
        %508 = vperm.xlu0 %507, %v505
        %v509 = vpop.permute.xlu0 %508
        %v511 = vunpack.c.l.s4 839922192
        %v512 = vunpack.c.0.s8 %v511
        %v513 = vlaneseq
        %v514 = vshrl.u32 %v513, 7
        %v515 = vsub.s32 %v512, %v514
        %v516 = vrot.slane %v509, %v515
        %v518 = vadd.f32 %v504, %v516
        %519 = vst [vmem:[%s351] sm:$0xff] %v518
        %s520 = sand.u32 %s190, 1
        %s521 = scalar_lea.sflag [#allocation4], %s520
        %s522 = sand.u32 %s190, 1
        %s523 = smul.addr %s522, 8
        %s524 = scalar_lea.vmem [#allocation5], %s523
        %s525 = sand.u32 %s218, 1
        %s526 = scalar_lea.sflag [#allocation7], %s525
        %s527 = sand.u32 %s218, 1
        %s528 = smul.addr %s527, 8
        %s529 = scalar_lea.vmem [#allocation6], %s528
        // Predicated region
        $region49: #{tpu_custom_call.1} parent=43 // pred_check
          %p530 = pneg %p200
        $region50: #{tpu_custom_call.1} parent=43 // pred_check_branch
          %532 = sbr.rel (%p530) target = $region52
        $region51: #{tpu_custom_call.1} parent=43 // pred_region
          %s533 = smul.u32 2, %s33
          %s535 = ssub.s32 128, 128
          %536 = vsyncadd %s521, %s535
          %s537 = smul.addr %s32, 2
          %s538 = sadd.s32 %s533, %s537
          %s539 = smul.addr %s538, 64
          %s540 = scalar_lea.hbm %s6, %s539
          %s542 = sshll.u32 %s524, 4
          %s543 = int_to_ptr.vmem [resolvable:$true] %s542
          %545 = dma.vmem_to_hbm [thread:$0]  %s543, 128, %s540, %s521
        $region52: #{tpu_custom_call.1} parent=43 // pred_fallthru
          _
        // Predicated region
        $region53: #{tpu_custom_call.1} parent=43 // pred_check
          %p546 = pneg %p228
        $region54: #{tpu_custom_call.1} parent=43 // pred_check_branch
          %548 = sbr.rel (%p546) target = $region56
        $region55: #{tpu_custom_call.1} parent=43 // pred_region
          %s549 = smul.u32 2, %s33
          %s551 = ssub.s32 128, 128
          %552 = vsyncadd %s526, %s551
          %s553 = smul.addr %s32, 2
          %s554 = sadd.s32 %s549, %s553
          %s555 = smul.addr %s554, 64
          %s556 = scalar_lea.hbm %s7, %s555
          %s558 = sshll.u32 %s529, 4
          %s559 = int_to_ptr.vmem [resolvable:$true] %s558
          %561 = dma.vmem_to_hbm [thread:$0]  %s559, 128, %s556, %s526
        $region56: #{tpu_custom_call.1} parent=43 // pred_fallthru
          _
      $region44: #{tpu_custom_call.1} parent=5 // pred_fallthru
        _
      %p562 = scmp.le.s32.totalorder 2, %s23
      // Predicated region
      $region57: #{tpu_custom_call.1} parent=5 // pred_check
        %p563 = pneg %p562
      $region58: #{tpu_custom_call.1} parent=5 // pred_check_branch
        %565 = sbr.rel (%p563) target = $region60
      $region59: #{tpu_custom_call.1} parent=5 // pred_region
        %s566 = ssub.s32 %s23, 2
        // Predicated region
        $region61: #{tpu_custom_call.1} parent=59 // pred_check
          %p567 = pneg %p206
        $region62: #{tpu_custom_call.1} parent=59 // pred_check_branch
          %569 = sbr.rel (%p567) target = $region64
        $region63: #{tpu_custom_call.1} parent=59 // pred_region
          %s570 = sand.u32 %s191, 1
          %s571 = scalar_lea.sflag [#allocation4], %s570
          %s572 = sand.u32 %s191, 1
          %s573 = smul.addr %s572, 8
          %s574 = scalar_lea.vmem [#allocation5], %s573
          %575 = dma.done %s571, 128
        $region64: #{tpu_custom_call.1} parent=59 // pred_fallthru
          _
        // Predicated region
        $region65: #{tpu_custom_call.1} parent=59 // pred_check
          %p576 = pneg %p234
        $region66: #{tpu_custom_call.1} parent=59 // pred_check_branch
          %578 = sbr.rel (%p576) target = $region68
        $region67: #{tpu_custom_call.1} parent=59 // pred_region
          %s579 = sand.u32 %s219, 1
          %s580 = scalar_lea.sflag [#allocation7], %s579
          %s581 = sand.u32 %s219, 1
          %s582 = smul.addr %s581, 8
          %s583 = scalar_lea.vmem [#allocation6], %s582
          %584 = dma.done %s580, 128
        $region68: #{tpu_custom_call.1} parent=59 // pred_fallthru
          _
      $region60: #{tpu_custom_call.1} parent=5 // pred_fallthru
        _
    $region6: #{tpu_custom_call.1} parent=1 // loop_footer
      %s27 = sadd.s32 1, %s23
    $region7: #{tpu_custom_call.1} parent=1 // loop_footer_branch
      %22 = sbr.rel target = $region3
    $region8: #{tpu_custom_call.1} parent=1 // loop_exit
      _
    %585 = vsyncpa [#allocation3], 1
    %s586 = scalar_lea.sflag [#allocation3], 1
    %587 = vsyncpa %s586, 1
    %588 = vsyncpa [#allocation4], 1
    %s589 = scalar_lea.sflag [#allocation4], 1
    %590 = vsyncpa %s589, 1
    %591 = vsyncpa [#allocation7], 1
    %s592 = scalar_lea.sflag [#allocation7], 1
    %593 = vsyncpa %s592, 1

</llo_original>
